<compile_context>
chip_gen: v7x
topology: tpu7x:2x2x1
jax: 0.10.0
libtpu: 0.0.40
codegen_flags: <defaults>
</compile_context>

<pallas_src>
import functools

import jax
import jax.numpy as jnp
from jax.experimental import pallas as pl
from jax.experimental.pallas import tpu as pltpu


def _full_rank_cov_kernel(ev_ref, vt_ref, out_ref, qt_ref, *, eps):
    # ev_ref : (dim, 1)   raw eigenvalue parameter (this batch element)
    # vt_ref : (dim, dim) row j == j-th column of the eigenvector parameter
    # out_ref: (dim, dim) covariance output
    # qt_ref : (dim, dim) VMEM scratch holding Q^T (row j == j-th column of Q)
    dim = vt_ref.shape[0]

    # softplus(eigenvalues) + eps   (eps*I folded into the spectrum)
    ev = ev_ref[...]
    sp = jnp.maximum(ev, 0.0) + jnp.log1p(jnp.exp(-jnp.abs(ev)))  # stable softplus
    ev_plus = sp + jnp.float32(eps)                               # (dim, 1), > 0

    vt = vt_ref[...]                                              # (dim, dim)

    # Scratch must start at zero every grid step so projections against
    # not-yet-written rows contribute nothing.
    qt_ref[...] = jnp.zeros_like(qt_ref)

    # CGS2 orthogonalization of the columns of the eigenvector matrix (= rows
    # of vt): per column, project out all previously computed orthonormal
    # columns at once (two whole-tile matvecs), done twice for stability.
    for j in range(dim):                                          # static unroll
        v = vt[j : j + 1, :]                                      # (1, dim)
        for _ in range(2):                                        # re-orthogonalize
            qt = qt_ref[...]                                      # (dim, dim)
            coef = jnp.sum(qt * v, axis=1, keepdims=True)         # (dim, 1) lane reduce
            v = v - jnp.sum(qt * coef, axis=0, keepdims=True)     # (1, dim) sublane reduce
        norm2 = jnp.sum(v * v)
        q = v * jax.lax.rsqrt(jnp.maximum(norm2, jnp.float32(1e-30)))
        qt_ref[j : j + 1, :] = q

    # cov = Q diag(ev_plus) Q^T = S^T S with S = diag(sqrt(ev_plus)) Q^T.
    # Exactly symmetric by construction -> no explicit symmetrization needed.
    s = qt_ref[...] * jnp.sqrt(ev_plus)                           # scale rows
    cov = jax.lax.dot_general(
        s, s, (((0,), (0,)), ((), ())), preferred_element_type=jnp.float32
    )                                                             # (dim, dim)
    out_ref[...] = cov


def full_rank_cov_batched(eigenvalues, eigenvectors, cov_add_eps=1e-8):
    """B independent FullRankCov instances in one gridded pallas_call.

    eigenvalues : (B, dim)       fp32
    eigenvectors: (B, dim, dim)  fp32
    returns     : (B, dim, dim)  fp32 covariance per instance
    """
    B, dim = eigenvalues.shape
    ev = eigenvalues.reshape(B, dim, 1).astype(jnp.float32)
    # rows of vt == columns of the eigenvector parameter (Gram-Schmidt walks rows)
    vt = jnp.swapaxes(eigenvectors, -1, -2).astype(jnp.float32)

    kernel = functools.partial(_full_rank_cov_kernel, eps=float(cov_add_eps))
    return pl.pallas_call(
        kernel,
        out_shape=jax.ShapeDtypeStruct((B, dim, dim), jnp.float32),
        grid_spec=pltpu.PrefetchScalarGridSpec(
            num_scalar_prefetch=0,
            grid=(B,),
            in_specs=[
                pl.BlockSpec((None, dim, 1), lambda b: (b, 0, 0)),
                pl.BlockSpec((None, dim, dim), lambda b: (b, 0, 0)),
            ],
            out_specs=pl.BlockSpec((None, dim, dim), lambda b: (b, 0, 0)),
            scratch_shapes=[pltpu.VMEM((dim, dim), jnp.float32)],
        ),
        compiler_params=pltpu.CompilerParams(
            dimension_semantics=("parallel",),
        ),
    )(ev, vt)


def full_rank_cov(eigenvalues, eigenvectors, cov_add_eps=1e-8):
    """Pallas implementation of FullRankCov.forward() for a single instance."""
    return full_rank_cov_batched(
        eigenvalues[None, :], eigenvectors[None, :, :], cov_add_eps
    )[0]


def full_rank_cov_ref(eigenvalues, eigenvectors, cov_add_eps=1e-8):
    """Pure-JAX reference mirroring the PyTorch module."""
    dim = eigenvectors.shape[-1]
    ev = jax.nn.softplus(eigenvalues)
    q, _ = jnp.linalg.qr(eigenvectors)
    cov = q @ jnp.diag(ev) @ q.T
    cov = (cov + cov.T) / 2.0
    return cov + jnp.eye(dim, dtype=cov.dtype) * cov_add_eps


if __name__ == "__main__":
    dim = 8
    cov_add_eps = 1e-8

    key = jax.random.PRNGKey(0)
    k1, k2, k3, k4 = jax.random.split(key, 4)
    # Deterministic synthetic parameters (matches nn.Parameter(torch.randn(...)) shapes).
    eigenvalues = jax.random.normal(k1, (dim,), dtype=jnp.float32)
    eigenvectors = jax.random.normal(k2, (dim, dim), dtype=jnp.float32)

    # Single-instance forward (matches the nn.Module).
    cov = jax.jit(full_rank_cov, static_argnums=2)(eigenvalues, eigenvectors, cov_add_eps)
    cov = jax.block_until_ready(cov)

    cov_ref = full_rank_cov_ref(eigenvalues, eigenvectors, cov_add_eps)
    assert cov.shape == (dim, dim) and cov.dtype == jnp.float32
    assert bool(jnp.all(jnp.isfinite(cov)))
    assert bool(jnp.allclose(cov, cov.T, atol=1e-6))             # symmetric
    assert bool(jnp.allclose(cov, cov_ref, atol=1e-4, rtol=1e-4))

    # Batched path: 4 independent instances in one pallas_call (grid=(4,)).
    B = 4
    ev_b = jax.random.normal(k3, (B, dim), dtype=jnp.float32)
    vec_b = jax.random.normal(k4, (B, dim, dim), dtype=jnp.float32)
    cov_b = jax.jit(full_rank_cov_batched, static_argnums=2)(ev_b, vec_b, cov_add_eps)
    cov_b = jax.block_until_ready(cov_b)
    for b in range(B):
        ref_b = full_rank_cov_ref(ev_b[b], vec_b[b], cov_add_eps)
        assert bool(jnp.allclose(cov_b[b], ref_b, atol=1e-4, rtol=1e-4))

    print("KERNEL_OK")
</pallas_src>

<mosaic_0001>
module attributes {stable_mosaic.version = 11 : i64} {
  func.func @_full_rank_cov_kernel(%arg0: i32, %arg1: memref<1x8x1xf32, #tpu.memory_space<vmem>>, %arg2: memref<1x8x8xf32, #tpu.memory_space<vmem>>, %arg3: memref<1x8x8xf32, #tpu.memory_space<vmem>>, %arg4: memref<8x8xf32, #tpu.memory_space<vmem>>) attributes {dimension_semantics = [#tpu.dimension_semantics<parallel>], iteration_bounds = array<i64: 1>, scalar_prefetch = 0 : i64, scratch_operands = 1 : i64, tpu.core_type = #tpu.core_type<tc>, window_params = [{transform_indices = @transform_0, window_bounds = array<i64: 1, 8, 1>}, {transform_indices = @transform_1, window_bounds = array<i64: 1, 8, 8>}, {transform_indices = @transform_2, window_bounds = array<i64: 1, 8, 8>}]} {
    %c0 = arith.constant 0 : index
    %c0_0 = arith.constant 0 : index
    %c0_1 = arith.constant 0 : index
    %0 = vector.load %arg1[%c0, %c0_0, %c0_1] : memref<1x8x1xf32, #tpu.memory_space<vmem>>, vector<1x8x1xf32>
    %1 = vector.shape_cast %0 : vector<1x8x1xf32> to vector<8x1xf32>
    %cst = arith.constant 0.000000e+00 : f32
    %2 = vector.broadcast %cst : f32 to vector<8x1xf32>
    %3 = arith.maximumf %1, %2 : vector<8x1xf32>
    %4 = math.absf %1 : vector<8x1xf32>
    %cst_2 = arith.constant 0.000000e+00 : f32
    %5 = vector.broadcast %cst_2 : f32 to vector<8x1xf32>
    %6 = arith.subf %5, %4 : vector<8x1xf32>
    %7 = math.exp %6 : vector<8x1xf32>
    %8 = math.log1p %7 : vector<8x1xf32>
    %9 = arith.addf %3, %8 : vector<8x1xf32>
    %cst_3 = arith.constant 9.99999993E-9 : f32
    %10 = vector.broadcast %cst_3 : f32 to vector<8x1xf32>
    %11 = arith.addf %9, %10 : vector<8x1xf32>
    %c0_4 = arith.constant 0 : index
    %c0_5 = arith.constant 0 : index
    %c0_6 = arith.constant 0 : index
    %12 = vector.load %arg2[%c0_4, %c0_5, %c0_6] : memref<1x8x8xf32, #tpu.memory_space<vmem>>, vector<1x8x8xf32>
    %13 = vector.shape_cast %12 : vector<1x8x8xf32> to vector<8x8xf32>
    %cst_7 = arith.constant 0.000000e+00 : f32
    %14 = vector.broadcast %cst_7 : f32 to vector<8x8xf32>
    %c0_8 = arith.constant 0 : index
    %c0_9 = arith.constant 0 : index
    %15 = vector.load %arg4[%c0_8, %c0_9] : memref<8x8xf32, #tpu.memory_space<vmem>>, vector<8x8xf32>
    tpu.vector_store %arg4[%c0_8, %c0_9], %14 {strides = array<i32>} : memref<8x8xf32, #tpu.memory_space<vmem>>, vector<8x8xf32>,
    %16 = vector.extract_strided_slice %13 {offsets = [0, 0], sizes = [1, 8], strides = [1, 1]} : vector<8x8xf32> to vector<1x8xf32>
    %c0_10 = arith.constant 0 : index
    %c0_11 = arith.constant 0 : index
    %17 = vector.load %arg4[%c0_10, %c0_11] : memref<8x8xf32, #tpu.memory_space<vmem>>, vector<8x8xf32>
    %18 = vector.broadcast %16 : vector<1x8xf32> to vector<8x8xf32>
    %19 = arith.mulf %17, %18 : vector<8x8xf32>
    %cst_12 = arith.constant dense<0.000000e+00> : vector<8xf32>
    %20 = vector.multi_reduction <add>, %19, %cst_12 [1] : vector<8x8xf32> to vector<8xf32>
    %21 = vector.shape_cast %20 : vector<8xf32> to vector<8x1xf32>
    %22 = vector.broadcast %21 : vector<8x1xf32> to vector<8x8xf32>
    %23 = arith.mulf %17, %22 : vector<8x8xf32>
    %cst_13 = arith.constant dense<0.000000e+00> : vector<8xf32>
    %24 = vector.multi_reduction <add>, %23, %cst_13 [0] : vector<8x8xf32> to vector<8xf32>
    %25 = vector.shape_cast %24 : vector<8xf32> to vector<1x8xf32>
    %26 = arith.subf %16, %25 : vector<1x8xf32>
    %c0_14 = arith.constant 0 : index
    %c0_15 = arith.constant 0 : index
    %27 = vector.load %arg4[%c0_14, %c0_15] : memref<8x8xf32, #tpu.memory_space<vmem>>, vector<8x8xf32>
    %28 = vector.broadcast %26 : vector<1x8xf32> to vector<8x8xf32>
    %29 = arith.mulf %27, %28 : vector<8x8xf32>
    %cst_16 = arith.constant dense<0.000000e+00> : vector<8xf32>
    %30 = vector.multi_reduction <add>, %29, %cst_16 [1] : vector<8x8xf32> to vector<8xf32>
    %31 = vector.shape_cast %30 : vector<8xf32> to vector<8x1xf32>
    %32 = vector.broadcast %31 : vector<8x1xf32> to vector<8x8xf32>
    %33 = arith.mulf %27, %32 : vector<8x8xf32>
    %cst_17 = arith.constant dense<0.000000e+00> : vector<8xf32>
    %34 = vector.multi_reduction <add>, %33, %cst_17 [0] : vector<8x8xf32> to vector<8xf32>
    %35 = vector.shape_cast %34 : vector<8xf32> to vector<1x8xf32>
    %36 = arith.subf %26, %35 : vector<1x8xf32>
    %37 = arith.mulf %36, %36 : vector<1x8xf32>
    %38 = vector.shape_cast %37 : vector<1x8xf32> to vector<1x1x8xf32>
    %cst_18 = arith.constant dense<0.000000e+00> : vector<1xf32>
    %39 = vector.multi_reduction <add>, %38, %cst_18 [1, 2] : vector<1x1x8xf32> to vector<1xf32>
    %40 = vector.shape_cast %39 : vector<1xf32> to vector<1x1x1xf32>
    %41 = vector.extract %40[0, 0, 0] : f32 from vector<1x1x1xf32>
    %cst_19 = arith.constant 1.000000e-30 : f32
    %42 = arith.maximumf %41, %cst_19 : f32
    %43 = math.rsqrt %42 : f32
    %44 = vector.broadcast %43 : f32 to vector<1x8xf32>
    %45 = arith.mulf %36, %44 : vector<1x8xf32>
    %c0_20 = arith.constant 0 : index
    %c0_21 = arith.constant 0 : index
    %46 = vector.load %arg4[%c0_20, %c0_21] : memref<8x8xf32, #tpu.memory_space<vmem>>, vector<1x8xf32>
    tpu.vector_store %arg4[%c0_20, %c0_21], %45 {strides = array<i32>} : memref<8x8xf32, #tpu.memory_space<vmem>>, vector<1x8xf32>,
    %47 = vector.extract_strided_slice %13 {offsets = [1, 0], sizes = [1, 8], strides = [1, 1]} : vector<8x8xf32> to vector<1x8xf32>
    %c0_22 = arith.constant 0 : index
    %c0_23 = arith.constant 0 : index
    %48 = vector.load %arg4[%c0_22, %c0_23] : memref<8x8xf32, #tpu.memory_space<vmem>>, vector<8x8xf32>
    %49 = vector.broadcast %47 : vector<1x8xf32> to vector<8x8xf32>
    %50 = arith.mulf %48, %49 : vector<8x8xf32>
    %cst_24 = arith.constant dense<0.000000e+00> : vector<8xf32>
    %51 = vector.multi_reduction <add>, %50, %cst_24 [1] : vector<8x8xf32> to vector<8xf32>
    %52 = vector.shape_cast %51 : vector<8xf32> to vector<8x1xf32>
    %53 = vector.broadcast %52 : vector<8x1xf32> to vector<8x8xf32>
    %54 = arith.mulf %48, %53 : vector<8x8xf32>
    %cst_25 = arith.constant dense<0.000000e+00> : vector<8xf32>
    %55 = vector.multi_reduction <add>, %54, %cst_25 [0] : vector<8x8xf32> to vector<8xf32>
    %56 = vector.shape_cast %55 : vector<8xf32> to vector<1x8xf32>
    %57 = arith.subf %47, %56 : vector<1x8xf32>
    %c0_26 = arith.constant 0 : index
    %c0_27 = arith.constant 0 : index
    %58 = vector.load %arg4[%c0_26, %c0_27] : memref<8x8xf32, #tpu.memory_space<vmem>>, vector<8x8xf32>
    %59 = vector.broadcast %57 : vector<1x8xf32> to vector<8x8xf32>
    %60 = arith.mulf %58, %59 : vector<8x8xf32>
    %cst_28 = arith.constant dense<0.000000e+00> : vector<8xf32>
    %61 = vector.multi_reduction <add>, %60, %cst_28 [1] : vector<8x8xf32> to vector<8xf32>
    %62 = vector.shape_cast %61 : vector<8xf32> to vector<8x1xf32>
    %63 = vector.broadcast %62 : vector<8x1xf32> to vector<8x8xf32>
    %64 = arith.mulf %58, %63 : vector<8x8xf32>
    %cst_29 = arith.constant dense<0.000000e+00> : vector<8xf32>
    %65 = vector.multi_reduction <add>, %64, %cst_29 [0] : vector<8x8xf32> to vector<8xf32>
    %66 = vector.shape_cast %65 : vector<8xf32> to vector<1x8xf32>
    %67 = arith.subf %57, %66 : vector<1x8xf32>
    %68 = arith.mulf %67, %67 : vector<1x8xf32>
    %69 = vector.shape_cast %68 : vector<1x8xf32> to vector<1x1x8xf32>
    %cst_30 = arith.constant dense<0.000000e+00> : vector<1xf32>
    %70 = vector.multi_reduction <add>, %69, %cst_30 [1, 2] : vector<1x1x8xf32> to vector<1xf32>
    %71 = vector.shape_cast %70 : vector<1xf32> to vector<1x1x1xf32>
    %72 = vector.extract %71[0, 0, 0] : f32 from vector<1x1x1xf32>
    %cst_31 = arith.constant 1.000000e-30 : f32
    %73 = arith.maximumf %72, %cst_31 : f32
    %74 = math.rsqrt %73 : f32
    %75 = vector.broadcast %74 : f32 to vector<1x8xf32>
    %76 = arith.mulf %67, %75 : vector<1x8xf32>
    %c1 = arith.constant 1 : index
    %c0_32 = arith.constant 0 : index
    %77 = vector.load %arg4[%c1, %c0_32] : memref<8x8xf32, #tpu.memory_space<vmem>>, vector<1x8xf32>
    tpu.vector_store %arg4[%c1, %c0_32], %76 {strides = array<i32>} : memref<8x8xf32, #tpu.memory_space<vmem>>, vector<1x8xf32>,
    %78 = vector.extract_strided_slice %13 {offsets = [2, 0], sizes = [1, 8], strides = [1, 1]} : vector<8x8xf32> to vector<1x8xf32>
    %c0_33 = arith.constant 0 : index
    %c0_34 = arith.constant 0 : index
    %79 = vector.load %arg4[%c0_33, %c0_34] : memref<8x8xf32, #tpu.memory_space<vmem>>, vector<8x8xf32>
    %80 = vector.broadcast %78 : vector<1x8xf32> to vector<8x8xf32>
    %81 = arith.mulf %79, %80 : vector<8x8xf32>
    %cst_35 = arith.constant dense<0.000000e+00> : vector<8xf32>
    %82 = vector.multi_reduction <add>, %81, %cst_35 [1] : vector<8x8xf32> to vector<8xf32>
    %83 = vector.shape_cast %82 : vector<8xf32> to vector<8x1xf32>
    %84 = vector.broadcast %83 : vector<8x1xf32> to vector<8x8xf32>
    %85 = arith.mulf %79, %84 : vector<8x8xf32>
    %cst_36 = arith.constant dense<0.000000e+00> : vector<8xf32>
    %86 = vector.multi_reduction <add>, %85, %cst_36 [0] : vector<8x8xf32> to vector<8xf32>
    %87 = vector.shape_cast %86 : vector<8xf32> to vector<1x8xf32>
    %88 = arith.subf %78, %87 : vector<1x8xf32>
    %c0_37 = arith.constant 0 : index
    %c0_38 = arith.constant 0 : index
    %89 = vector.load %arg4[%c0_37, %c0_38] : memref<8x8xf32, #tpu.memory_space<vmem>>, vector<8x8xf32>
    %90 = vector.broadcast %88 : vector<1x8xf32> to vector<8x8xf32>
    %91 = arith.mulf %89, %90 : vector<8x8xf32>
    %cst_39 = arith.constant dense<0.000000e+00> : vector<8xf32>
    %92 = vector.multi_reduction <add>, %91, %cst_39 [1] : vector<8x8xf32> to vector<8xf32>
    %93 = vector.shape_cast %92 : vector<8xf32> to vector<8x1xf32>
    %94 = vector.broadcast %93 : vector<8x1xf32> to vector<8x8xf32>
    %95 = arith.mulf %89, %94 : vector<8x8xf32>
    %cst_40 = arith.constant dense<0.000000e+00> : vector<8xf32>
    %96 = vector.multi_reduction <add>, %95, %cst_40 [0] : vector<8x8xf32> to vector<8xf32>
    %97 = vector.shape_cast %96 : vector<8xf32> to vector<1x8xf32>
    %98 = arith.subf %88, %97 : vector<1x8xf32>
    %99 = arith.mulf %98, %98 : vector<1x8xf32>
    %100 = vector.shape_cast %99 : vector<1x8xf32> to vector<1x1x8xf32>
    %cst_41 = arith.constant dense<0.000000e+00> : vector<1xf32>
    %101 = vector.multi_reduction <add>, %100, %cst_41 [1, 2] : vector<1x1x8xf32> to vector<1xf32>
    %102 = vector.shape_cast %101 : vector<1xf32> to vector<1x1x1xf32>
    %103 = vector.extract %102[0, 0, 0] : f32 from vector<1x1x1xf32>
    %cst_42 = arith.constant 1.000000e-30 : f32
    %104 = arith.maximumf %103, %cst_42 : f32
    %105 = math.rsqrt %104 : f32
    %106 = vector.broadcast %105 : f32 to vector<1x8xf32>
    %107 = arith.mulf %98, %106 : vector<1x8xf32>
    %c2 = arith.constant 2 : index
    %c0_43 = arith.constant 0 : index
    %108 = vector.load %arg4[%c2, %c0_43] : memref<8x8xf32, #tpu.memory_space<vmem>>, vector<1x8xf32>
    tpu.vector_store %arg4[%c2, %c0_43], %107 {strides = array<i32>} : memref<8x8xf32, #tpu.memory_space<vmem>>, vector<1x8xf32>,
    %109 = vector.extract_strided_slice %13 {offsets = [3, 0], sizes = [1, 8], strides = [1, 1]} : vector<8x8xf32> to vector<1x8xf32>
    %c0_44 = arith.constant 0 : index
    %c0_45 = arith.constant 0 : index
    %110 = vector.load %arg4[%c0_44, %c0_45] : memref<8x8xf32, #tpu.memory_space<vmem>>, vector<8x8xf32>
    %111 = vector.broadcast %109 : vector<1x8xf32> to vector<8x8xf32>
    %112 = arith.mulf %110, %111 : vector<8x8xf32>
    %cst_46 = arith.constant dense<0.000000e+00> : vector<8xf32>
    %113 = vector.multi_reduction <add>, %112, %cst_46 [1] : vector<8x8xf32> to vector<8xf32>
    %114 = vector.shape_cast %113 : vector<8xf32> to vector<8x1xf32>
    %115 = vector.broadcast %114 : vector<8x1xf32> to vector<8x8xf32>
    %116 = arith.mulf %110, %115 : vector<8x8xf32>
    %cst_47 = arith.constant dense<0.000000e+00> : vector<8xf32>
    %117 = vector.multi_reduction <add>, %116, %cst_47 [0] : vector<8x8xf32> to vector<8xf32>
    %118 = vector.shape_cast %117 : vector<8xf32> to vector<1x8xf32>
    %119 = arith.subf %109, %118 : vector<1x8xf32>
    %c0_48 = arith.constant 0 : index
    %c0_49 = arith.constant 0 : index
    %120 = vector.load %arg4[%c0_48, %c0_49] : memref<8x8xf32, #tpu.memory_space<vmem>>, vector<8x8xf32>
    %121 = vector.broadcast %119 : vector<1x8xf32> to vector<8x8xf32>
    %122 = arith.mulf %120, %121 : vector<8x8xf32>
    %cst_50 = arith.constant dense<0.000000e+00> : vector<8xf32>
    %123 = vector.multi_reduction <add>, %122, %cst_50 [1] : vector<8x8xf32> to vector<8xf32>
    %124 = vector.shape_cast %123 : vector<8xf32> to vector<8x1xf32>
    %125 = vector.broadcast %124 : vector<8x1xf32> to vector<8x8xf32>
    %126 = arith.mulf %120, %125 : vector<8x8xf32>
    %cst_51 = arith.constant dense<0.000000e+00> : vector<8xf32>
    %127 = vector.multi_reduction <add>, %126, %cst_51 [0] : vector<8x8xf32> to vector<8xf32>
    %128 = vector.shape_cast %127 : vector<8xf32> to vector<1x8xf32>
    %129 = arith.subf %119, %128 : vector<1x8xf32>
    %130 = arith.mulf %129, %129 : vector<1x8xf32>
    %131 = vector.shape_cast %130 : vector<1x8xf32> to vector<1x1x8xf32>
    %cst_52 = arith.constant dense<0.000000e+00> : vector<1xf32>
    %132 = vector.multi_reduction <add>, %131, %cst_52 [1, 2] : vector<1x1x8xf32> to vector<1xf32>
    %133 = vector.shape_cast %132 : vector<1xf32> to vector<1x1x1xf32>
    %134 = vector.extract %133[0, 0, 0] : f32 from vector<1x1x1xf32>
    %cst_53 = arith.constant 1.000000e-30 : f32
    %135 = arith.maximumf %134, %cst_53 : f32
    %136 = math.rsqrt %135 : f32
    %137 = vector.broadcast %136 : f32 to vector<1x8xf32>
    %138 = arith.mulf %129, %137 : vector<1x8xf32>
    %c3 = arith.constant 3 : index
    %c0_54 = arith.constant 0 : index
    %139 = vector.load %arg4[%c3, %c0_54] : memref<8x8xf32, #tpu.memory_space<vmem>>, vector<1x8xf32>
    tpu.vector_store %arg4[%c3, %c0_54], %138 {strides = array<i32>} : memref<8x8xf32, #tpu.memory_space<vmem>>, vector<1x8xf32>,
    %140 = vector.extract_strided_slice %13 {offsets = [4, 0], sizes = [1, 8], strides = [1, 1]} : vector<8x8xf32> to vector<1x8xf32>
    %c0_55 = arith.constant 0 : index
    %c0_56 = arith.constant 0 : index
    %141 = vector.load %arg4[%c0_55, %c0_56] : memref<8x8xf32, #tpu.memory_space<vmem>>, vector<8x8xf32>
    %142 = vector.broadcast %140 : vector<1x8xf32> to vector<8x8xf32>
    %143 = arith.mulf %141, %142 : vector<8x8xf32>
    %cst_57 = arith.constant dense<0.000000e+00> : vector<8xf32>
    %144 = vector.multi_reduction <add>, %143, %cst_57 [1] : vector<8x8xf32> to vector<8xf32>
    %145 = vector.shape_cast %144 : vector<8xf32> to vector<8x1xf32>
    %146 = vector.broadcast %145 : vector<8x1xf32> to vector<8x8xf32>
    %147 = arith.mulf %141, %146 : vector<8x8xf32>
    %cst_58 = arith.constant dense<0.000000e+00> : vector<8xf32>
    %148 = vector.multi_reduction <add>, %147, %cst_58 [0] : vector<8x8xf32> to vector<8xf32>
    %149 = vector.shape_cast %148 : vector<8xf32> to vector<1x8xf32>
    %150 = arith.subf %140, %149 : vector<1x8xf32>
    %c0_59 = arith.constant 0 : index
    %c0_60 = arith.constant 0 : index
    %151 = vector.load %arg4[%c0_59, %c0_60] : memref<8x8xf32, #tpu.memory_space<vmem>>, vector<8x8xf32>
    %152 = vector.broadcast %150 : vector<1x8xf32> to vector<8x8xf32>
    %153 = arith.mulf %151, %152 : vector<8x8xf32>
    %cst_61 = arith.constant dense<0.000000e+00> : vector<8xf32>
    %154 = vector.multi_reduction <add>, %153, %cst_61 [1] : vector<8x8xf32> to vector<8xf32>
    %155 = vector.shape_cast %154 : vector<8xf32> to vector<8x1xf32>
    %156 = vector.broadcast %155 : vector<8x1xf32> to vector<8x8xf32>
    %157 = arith.mulf %151, %156 : vector<8x8xf32>
    %cst_62 = arith.constant dense<0.000000e+00> : vector<8xf32>
    %158 = vector.multi_reduction <add>, %157, %cst_62 [0] : vector<8x8xf32> to vector<8xf32>
    %159 = vector.shape_cast %158 : vector<8xf32> to vector<1x8xf32>
    %160 = arith.subf %150, %159 : vector<1x8xf32>
    %161 = arith.mulf %160, %160 : vector<1x8xf32>
    %162 = vector.shape_cast %161 : vector<1x8xf32> to vector<1x1x8xf32>
    %cst_63 = arith.constant dense<0.000000e+00> : vector<1xf32>
    %163 = vector.multi_reduction <add>, %162, %cst_63 [1, 2] : vector<1x1x8xf32> to vector<1xf32>
    %164 = vector.shape_cast %163 : vector<1xf32> to vector<1x1x1xf32>
    %165 = vector.extract %164[0, 0, 0] : f32 from vector<1x1x1xf32>
    %cst_64 = arith.constant 1.000000e-30 : f32
    %166 = arith.maximumf %165, %cst_64 : f32
    %167 = math.rsqrt %166 : f32
    %168 = vector.broadcast %167 : f32 to vector<1x8xf32>
    %169 = arith.mulf %160, %168 : vector<1x8xf32>
    %c4 = arith.constant 4 : index
    %c0_65 = arith.constant 0 : index
    %170 = vector.load %arg4[%c4, %c0_65] : memref<8x8xf32, #tpu.memory_space<vmem>>, vector<1x8xf32>
    tpu.vector_store %arg4[%c4, %c0_65], %169 {strides = array<i32>} : memref<8x8xf32, #tpu.memory_space<vmem>>, vector<1x8xf32>,
    %171 = vector.extract_strided_slice %13 {offsets = [5, 0], sizes = [1, 8], strides = [1, 1]} : vector<8x8xf32> to vector<1x8xf32>
    %c0_66 = arith.constant 0 : index
    %c0_67 = arith.constant 0 : index
    %172 = vector.load %arg4[%c0_66, %c0_67] : memref<8x8xf32, #tpu.memory_space<vmem>>, vector<8x8xf32>
    %173 = vector.broadcast %171 : vector<1x8xf32> to vector<8x8xf32>
    %174 = arith.mulf %172, %173 : vector<8x8xf32>
    %cst_68 = arith.constant dense<0.000000e+00> : vector<8xf32>
    %175 = vector.multi_reduction <add>, %174, %cst_68 [1] : vector<8x8xf32> to vector<8xf32>
    %176 = vector.shape_cast %175 : vector<8xf32> to vector<8x1xf32>
    %177 = vector.broadcast %176 : vector<8x1xf32> to vector<8x8xf32>
    %178 = arith.mulf %172, %177 : vector<8x8xf32>
    %cst_69 = arith.constant dense<0.000000e+00> : vector<8xf32>
    %179 = vector.multi_reduction <add>, %178, %cst_69 [0] : vector<8x8xf32> to vector<8xf32>
    %180 = vector.shape_cast %179 : vector<8xf32> to vector<1x8xf32>
    %181 = arith.subf %171, %180 : vector<1x8xf32>
    %c0_70 = arith.constant 0 : index
    %c0_71 = arith.constant 0 : index
    %182 = vector.load %arg4[%c0_70, %c0_71] : memref<8x8xf32, #tpu.memory_space<vmem>>, vector<8x8xf32>
    %183 = vector.broadcast %181 : vector<1x8xf32> to vector<8x8xf32>
    %184 = arith.mulf %182, %183 : vector<8x8xf32>
    %cst_72 = arith.constant dense<0.000000e+00> : vector<8xf32>
    %185 = vector.multi_reduction <add>, %184, %cst_72 [1] : vector<8x8xf32> to vector<8xf32>
    %186 = vector.shape_cast %185 : vector<8xf32> to vector<8x1xf32>
    %187 = vector.broadcast %186 : vector<8x1xf32> to vector<8x8xf32>
    %188 = arith.mulf %182, %187 : vector<8x8xf32>
    %cst_73 = arith.constant dense<0.000000e+00> : vector<8xf32>
    %189 = vector.multi_reduction <add>, %188, %cst_73 [0] : vector<8x8xf32> to vector<8xf32>
    %190 = vector.shape_cast %189 : vector<8xf32> to vector<1x8xf32>
    %191 = arith.subf %181, %190 : vector<1x8xf32>
    %192 = arith.mulf %191, %191 : vector<1x8xf32>
    %193 = vector.shape_cast %192 : vector<1x8xf32> to vector<1x1x8xf32>
    %cst_74 = arith.constant dense<0.000000e+00> : vector<1xf32>
    %194 = vector.multi_reduction <add>, %193, %cst_74 [1, 2] : vector<1x1x8xf32> to vector<1xf32>
    %195 = vector.shape_cast %194 : vector<1xf32> to vector<1x1x1xf32>
    %196 = vector.extract %195[0, 0, 0] : f32 from vector<1x1x1xf32>
    %cst_75 = arith.constant 1.000000e-30 : f32
    %197 = arith.maximumf %196, %cst_75 : f32
    %198 = math.rsqrt %197 : f32
    %199 = vector.broadcast %198 : f32 to vector<1x8xf32>
    %200 = arith.mulf %191, %199 : vector<1x8xf32>
    %c5 = arith.constant 5 : index
    %c0_76 = arith.constant 0 : index
    %201 = vector.load %arg4[%c5, %c0_76] : memref<8x8xf32, #tpu.memory_space<vmem>>, vector<1x8xf32>
    tpu.vector_store %arg4[%c5, %c0_76], %200 {strides = array<i32>} : memref<8x8xf32, #tpu.memory_space<vmem>>, vector<1x8xf32>,
    %202 = vector.extract_strided_slice %13 {offsets = [6, 0], sizes = [1, 8], strides = [1, 1]} : vector<8x8xf32> to vector<1x8xf32>
    %c0_77 = arith.constant 0 : index
    %c0_78 = arith.constant 0 : index
    %203 = vector.load %arg4[%c0_77, %c0_78] : memref<8x8xf32, #tpu.memory_space<vmem>>, vector<8x8xf32>
    %204 = vector.broadcast %202 : vector<1x8xf32> to vector<8x8xf32>
    %205 = arith.mulf %203, %204 : vector<8x8xf32>
    %cst_79 = arith.constant dense<0.000000e+00> : vector<8xf32>
    %206 = vector.multi_reduction <add>, %205, %cst_79 [1] : vector<8x8xf32> to vector<8xf32>
    %207 = vector.shape_cast %206 : vector<8xf32> to vector<8x1xf32>
    %208 = vector.broadcast %207 : vector<8x1xf32> to vector<8x8xf32>
    %209 = arith.mulf %203, %208 : vector<8x8xf32>
    %cst_80 = arith.constant dense<0.000000e+00> : vector<8xf32>
    %210 = vector.multi_reduction <add>, %209, %cst_80 [0] : vector<8x8xf32> to vector<8xf32>
    %211 = vector.shape_cast %210 : vector<8xf32> to vector<1x8xf32>
    %212 = arith.subf %202, %211 : vector<1x8xf32>
    %c0_81 = arith.constant 0 : index
    %c0_82 = arith.constant 0 : index
    %213 = vector.load %arg4[%c0_81, %c0_82] : memref<8x8xf32, #tpu.memory_space<vmem>>, vector<8x8xf32>
    %214 = vector.broadcast %212 : vector<1x8xf32> to vector<8x8xf32>
    %215 = arith.mulf %213, %214 : vector<8x8xf32>
    %cst_83 = arith.constant dense<0.000000e+00> : vector<8xf32>
    %216 = vector.multi_reduction <add>, %215, %cst_83 [1] : vector<8x8xf32> to vector<8xf32>
    %217 = vector.shape_cast %216 : vector<8xf32> to vector<8x1xf32>
    %218 = vector.broadcast %217 : vector<8x1xf32> to vector<8x8xf32>
    %219 = arith.mulf %213, %218 : vector<8x8xf32>
    %cst_84 = arith.constant dense<0.000000e+00> : vector<8xf32>
    %220 = vector.multi_reduction <add>, %219, %cst_84 [0] : vector<8x8xf32> to vector<8xf32>
    %221 = vector.shape_cast %220 : vector<8xf32> to vector<1x8xf32>
    %222 = arith.subf %212, %221 : vector<1x8xf32>
    %223 = arith.mulf %222, %222 : vector<1x8xf32>
    %224 = vector.shape_cast %223 : vector<1x8xf32> to vector<1x1x8xf32>
    %cst_85 = arith.constant dense<0.000000e+00> : vector<1xf32>
    %225 = vector.multi_reduction <add>, %224, %cst_85 [1, 2] : vector<1x1x8xf32> to vector<1xf32>
    %226 = vector.shape_cast %225 : vector<1xf32> to vector<1x1x1xf32>
    %227 = vector.extract %226[0, 0, 0] : f32 from vector<1x1x1xf32>
    %cst_86 = arith.constant 1.000000e-30 : f32
    %228 = arith.maximumf %227, %cst_86 : f32
    %229 = math.rsqrt %228 : f32
    %230 = vector.broadcast %229 : f32 to vector<1x8xf32>
    %231 = arith.mulf %222, %230 : vector<1x8xf32>
    %c6 = arith.constant 6 : index
    %c0_87 = arith.constant 0 : index
    %232 = vector.load %arg4[%c6, %c0_87] : memref<8x8xf32, #tpu.memory_space<vmem>>, vector<1x8xf32>
    tpu.vector_store %arg4[%c6, %c0_87], %231 {strides = array<i32>} : memref<8x8xf32, #tpu.memory_space<vmem>>, vector<1x8xf32>,
    %233 = vector.extract_strided_slice %13 {offsets = [7, 0], sizes = [1, 8], strides = [1, 1]} : vector<8x8xf32> to vector<1x8xf32>
    %c0_88 = arith.constant 0 : index
    %c0_89 = arith.constant 0 : index
    %234 = vector.load %arg4[%c0_88, %c0_89] : memref<8x8xf32, #tpu.memory_space<vmem>>, vector<8x8xf32>
    %235 = vector.broadcast %233 : vector<1x8xf32> to vector<8x8xf32>
    %236 = arith.mulf %234, %235 : vector<8x8xf32>
    %cst_90 = arith.constant dense<0.000000e+00> : vector<8xf32>
    %237 = vector.multi_reduction <add>, %236, %cst_90 [1] : vector<8x8xf32> to vector<8xf32>
    %238 = vector.shape_cast %237 : vector<8xf32> to vector<8x1xf32>
    %239 = vector.broadcast %238 : vector<8x1xf32> to vector<8x8xf32>
    %240 = arith.mulf %234, %239 : vector<8x8xf32>
    %cst_91 = arith.constant dense<0.000000e+00> : vector<8xf32>
    %241 = vector.multi_reduction <add>, %240, %cst_91 [0] : vector<8x8xf32> to vector<8xf32>
    %242 = vector.shape_cast %241 : vector<8xf32> to vector<1x8xf32>
    %243 = arith.subf %233, %242 : vector<1x8xf32>
    %c0_92 = arith.constant 0 : index
    %c0_93 = arith.constant 0 : index
    %244 = vector.load %arg4[%c0_92, %c0_93] : memref<8x8xf32, #tpu.memory_space<vmem>>, vector<8x8xf32>
    %245 = vector.broadcast %243 : vector<1x8xf32> to vector<8x8xf32>
    %246 = arith.mulf %244, %245 : vector<8x8xf32>
    %cst_94 = arith.constant dense<0.000000e+00> : vector<8xf32>
    %247 = vector.multi_reduction <add>, %246, %cst_94 [1] : vector<8x8xf32> to vector<8xf32>
    %248 = vector.shape_cast %247 : vector<8xf32> to vector<8x1xf32>
    %249 = vector.broadcast %248 : vector<8x1xf32> to vector<8x8xf32>
    %250 = arith.mulf %244, %249 : vector<8x8xf32>
    %cst_95 = arith.constant dense<0.000000e+00> : vector<8xf32>
    %251 = vector.multi_reduction <add>, %250, %cst_95 [0] : vector<8x8xf32> to vector<8xf32>
    %252 = vector.shape_cast %251 : vector<8xf32> to vector<1x8xf32>
    %253 = arith.subf %243, %252 : vector<1x8xf32>
    %254 = arith.mulf %253, %253 : vector<1x8xf32>
    %255 = vector.shape_cast %254 : vector<1x8xf32> to vector<1x1x8xf32>
    %cst_96 = arith.constant dense<0.000000e+00> : vector<1xf32>
    %256 = vector.multi_reduction <add>, %255, %cst_96 [1, 2] : vector<1x1x8xf32> to vector<1xf32>
    %257 = vector.shape_cast %256 : vector<1xf32> to vector<1x1x1xf32>
    %258 = vector.extract %257[0, 0, 0] : f32 from vector<1x1x1xf32>
    %cst_97 = arith.constant 1.000000e-30 : f32
    %259 = arith.maximumf %258, %cst_97 : f32
    %260 = math.rsqrt %259 : f32
    %261 = vector.broadcast %260 : f32 to vector<1x8xf32>
    %262 = arith.mulf %253, %261 : vector<1x8xf32>
    %c7 = arith.constant 7 : index
    %c0_98 = arith.constant 0 : index
    %263 = vector.load %arg4[%c7, %c0_98] : memref<8x8xf32, #tpu.memory_space<vmem>>, vector<1x8xf32>
    tpu.vector_store %arg4[%c7, %c0_98], %262 {strides = array<i32>} : memref<8x8xf32, #tpu.memory_space<vmem>>, vector<1x8xf32>,
    %c0_99 = arith.constant 0 : index
    %c0_100 = arith.constant 0 : index
    %264 = vector.load %arg4[%c0_99, %c0_100] : memref<8x8xf32, #tpu.memory_space<vmem>>, vector<8x8xf32>
    %265 = math.sqrt %11 : vector<8x1xf32>
    %266 = vector.broadcast %265 : vector<8x1xf32> to vector<8x8xf32>
    %267 = arith.mulf %264, %266 : vector<8x8xf32>
    %cst_101 = arith.constant dense<0.000000e+00> : vector<8x8xf32>
    %268 = tpu.matmul %267, %267, %cst_101 {dimension_numbers = #tpu.dot_dimension_numbers<[0], [0], [1], [1], [0, 1, 1, 1], [], []>} : vector<8x8xf32>, vector<8x8xf32>, vector<8x8xf32> -> vector<8x8xf32>
    %c0_102 = arith.constant 0 : index
    %c0_103 = arith.constant 0 : index
    %c0_104 = arith.constant 0 : index
    %269 = vector.load %arg3[%c0_102, %c0_103, %c0_104] : memref<1x8x8xf32, #tpu.memory_space<vmem>>, vector<1x8x8xf32>
    %270 = vector.shape_cast %269 : vector<1x8x8xf32> to vector<8x8xf32>
    %271 = vector.shape_cast %268 : vector<8x8xf32> to vector<1x8x8xf32>
    tpu.vector_store %arg3[%c0_102, %c0_103, %c0_104], %271 {strides = array<i32>} : memref<1x8x8xf32, #tpu.memory_space<vmem>>, vector<1x8x8xf32>,
    return
  }
  func.func @transform_0(%arg0: i32) -> (i32, i32, i32) {
    %c0_i32 = arith.constant 0 : i32
    %c0_i32_0 = arith.constant 0 : i32
    %c0_i32_1 = arith.constant 0 : i32
    return %arg0, %c0_i32, %c0_i32_0 : i32, i32, i32
  }
  func.func @transform_1(%arg0: i32) -> (i32, i32, i32) {
    %c0_i32 = arith.constant 0 : i32
    %c0_i32_0 = arith.constant 0 : i32
    %c0_i32_1 = arith.constant 0 : i32
    return %arg0, %c0_i32, %c0_i32_0 : i32, i32, i32
  }
  func.func @transform_2(%arg0: i32) -> (i32, i32, i32) {
    %c0_i32 = arith.constant 0 : i32
    %c0_i32_0 = arith.constant 0 : i32
    %c0_i32_1 = arith.constant 0 : i32
    return %arg0, %c0_i32, %c0_i32_0 : i32, i32, i32
  }
}

</mosaic_0001>

<llo_original>
// kernel: full_rank_cov.1
$region0: #{full_rank_cov.1}
  #allocation0 [shape = 'u32[]', space=smem, size = 0x4, offset = 0x4, fixed_abs, tag = 'smem constant byte address 0x4 - core index']
  #allocation1 [shape = 'u32[144,128]{1,0:T(1,128)}', space=vmem, size = 0x12000, scoped, tag = 'internal scratch']
  #allocation2 [shape = 'f32[8,8]{1,0:T(8,128)}', space=vmem, size = 0x1000, scoped, tag = 'scratch operand']
  %s0 = inlined_call_operand.vmem [shape: f32[1,8,1], index: 0, kind: input, shape index: {}]
  %s1 = inlined_call_operand.vmem [shape: f32[1,8,8], index: 1, kind: input, shape index: {}]
  %s2 = inlined_call_operand.hbm [shape: f32[1,8,8], index: 2, kind: output, shape index: {}]
  %s3 = sld [smem:[#allocation0]]
  $region18: #{full_rank_cov.1} parent=0
    _
  %s5 = ssub.s32 1, %s3
  %s6 = scalar_select 0, %s5, %s3
  $region1: #{full_rank_cov.1} parent=0
    #allocation3 [shape = 'u8[4096]{0}', space=vmem, size = 0x1000, scoped, tag = 'output window, operand 0, single buffered']
    #allocation4 [shape = 's32[1]{0}', space=sflag, size = 0x4, scoped, tag = 'scoped memory for full_rank_cov.1']
    %7 = vsyncpa [#allocation4], 0
    // Predicated region
    $region2: #{full_rank_cov.1} parent=1 // pred_check
      _
    $region3: #{full_rank_cov.1} parent=1 // pred_check_branch
      %9 = sbr.rel (0) target = $region5
    $region4: #{full_rank_cov.1} parent=1 // pred_region
      _
    $region5: #{full_rank_cov.1} parent=1 // pred_fallthru
      _
    // Predicated region
    $region6: #{full_rank_cov.1} parent=1 // pred_check
      _
    $region7: #{full_rank_cov.1} parent=1 // pred_check_branch
      %11 = sbr.rel (0) target = $region9
    $region8: #{full_rank_cov.1} parent=1 // pred_region
      _
    $region9: #{full_rank_cov.1} parent=1 // pred_fallthru
      _
    %v12 = vld [vmem:[%s0] sm:$0xff]
    %v13 = vmax.f32 %v12, 0.0
    %v14 = vand.u32 2147483647, %v12
    %v15 = vsub.f32 0.0, %v14
    %v16 = vmul.f32 %v15, 1.442695
    %v17 = vpow.pop %v16
    %v18 = vadd.f32 %v17, 1.0
    %v19 = vlog2.pop %v18
    %v20 = vmul.f32 %v19, 0.6931472
    %v21 = vmul.f32 -0.5, %v17
    %v22 = vadd.f32 %v21, 1.0
    %v23 = vmul.f32 %v22, %v17
    %v24 = vand.u32 2147483647, %v17
    %vm25 = vcmp.lt.f32.partialorder %v24, 0.0004427343
    %v26 = vsel %vm25, %v23, %v20
    %v27 = vadd.f32 %v13, %v26
    %v28 = vadd.f32 %v27, 1e-08
    %v29 = vld [vmem:[%s1] sm:$0xff]
    %vm30 = vcmask 64512
    %31 = vst.msk [vmem:[#allocation2] sm:$0xff] %vm30, 0.0
    %v32 = vld [vmem:[#allocation2] sm:$0xff]
    %v33 = vlaneseq
    %v34 = vshrl.u32 %v33, 7
    %v35 = vsub.s32 0, %v34
    %v36 = vrot.slane %v29, %v35
    %v37 = vmul.f32 %v32, %v36
    %v38 = vsel %vm30, %v37, 0.0
    %39 = vadd.xlane.f32.xlu0 %v38
    %v40 = vpop.xlane.xlu0 %39
    %v41 = vmul.f32 %v32, %v40
    %v42 = vsel %vm30, %v41, 0.0
    %v43 = vrot.slane %v42, 4
    %v44 = vadd.f32 %v42, %v43
    %v45 = vrot.slane %v44, 2
    %v46 = vadd.f32 %v44, %v45
    %v47 = vrot.slane %v46, 1
    %v48 = vadd.f32 %v46, %v47
    %v49 = vsub.f32 %v29, %v48
    %v50 = vlaneseq
    %v51 = vshrl.u32 %v50, 7
    %v52 = vsub.s32 0, %v51
    %v53 = vrot.slane %v49, %v52
    %v54 = vmul.f32 %v32, %v53
    %v55 = vsel %vm30, %v54, 0.0
    %56 = vadd.xlane.f32.xlu0 %v55
    %v57 = vpop.xlane.xlu0 %56
    %v58 = vmul.f32 %v32, %v57
    %v59 = vsel %vm30, %v58, 0.0
    %v60 = vrot.slane %v59, 4
    %v61 = vadd.f32 %v59, %v60
    %v62 = vrot.slane %v61, 2
    %v63 = vadd.f32 %v61, %v62
    %v64 = vrot.slane %v63, 1
    %v65 = vadd.f32 %v63, %v64
    %v66 = vsub.f32 %v49, %v65
    %v67 = vmul.f32 %v66, %v66
    %vm68 = vcmask 57344
    %v69 = vsel %vm68, %v67, 0.0
    %70 = vadd.xlane.f32.xlu0 %v69
    %v71 = vpop.xlane.xlu0 %70
    %v72 = vrot.slane %v71, 4
    %v73 = vadd.f32 %v71, %v72
    %v74 = vrot.slane %v73, 2
    %v75 = vadd.f32 %v73, %v74
    %v76 = vrot.slane %v75, 1
    %v77 = vadd.f32 %v75, %v76
    %s78 = vtos %v77
    %s79 = smax.f32 %s78, 1e-30
    %v80 = vstv %s79
    %v81 = vrsqrt.pop %v80
    %s82 = vtos %v81
    %v83 = vstv %s82
    %v84 = vmul.f32 %v66, %v83
    %85 = vst.msk [vmem:[#allocation2] sm:$0x1] %vm68, %v84
    %v86 = vld [vmem:[#allocation2] sm:$0xff]
    %v87 = vlaneseq
    %v88 = vshrl.u32 %v87, 7
    %v89 = vsub.s32 1, %v88
    %v90 = vrot.slane %v29, %v89
    %v91 = vmul.f32 %v86, %v90
    %v92 = vsel %vm30, %v91, 0.0
    %93 = vadd.xlane.f32.xlu0 %v92
    %v94 = vpop.xlane.xlu0 %93
    %v95 = vmul.f32 %v86, %v94
    %v96 = vsel %vm30, %v95, 0.0
    %v97 = vrot.slane %v96, 4
    %v98 = vadd.f32 %v96, %v97
    %v99 = vrot.slane %v98, 2
    %v100 = vadd.f32 %v98, %v99
    %v101 = vrot.slane %v100, 1
    %v102 = vadd.f32 %v100, %v101
    %v103 = vsub.f32 %v29, %v102
    %v104 = vlaneseq
    %v105 = vshrl.u32 %v104, 7
    %v106 = vsub.s32 1, %v105
    %v107 = vrot.slane %v103, %v106
    %v108 = vmul.f32 %v86, %v107
    %v109 = vsel %vm30, %v108, 0.0
    %110 = vadd.xlane.f32.xlu0 %v109
    %v111 = vpop.xlane.xlu0 %110
    %v112 = vmul.f32 %v86, %v111
    %v113 = vsel %vm30, %v112, 0.0
    %v114 = vrot.slane %v113, 4
    %v115 = vadd.f32 %v113, %v114
    %v116 = vrot.slane %v115, 2
    %v117 = vadd.f32 %v115, %v116
    %v118 = vrot.slane %v117, 1
    %v119 = vadd.f32 %v117, %v118
    %v120 = vsub.f32 %v103, %v119
    %v121 = vmul.f32 %v120, %v120
    %v123 = vrot.slane %v121, 1
    %v125 = vsel %vm68, %v123, 0.0
    %126 = vadd.xlane.f32.xlu0 %v125
    %v127 = vpop.xlane.xlu0 %126
    %v128 = vrot.slane %v127, 4
    %v129 = vadd.f32 %v127, %v128
    %v130 = vrot.slane %v129, 2
    %v131 = vadd.f32 %v129, %v130
    %v132 = vrot.slane %v131, 1
    %v133 = vadd.f32 %v131, %v132
    %s134 = vtos %v133
    %s135 = smax.f32 %s134, 1e-30
    %v136 = vstv %s135
    %v137 = vrsqrt.pop %v136
    %s138 = vtos %v137
    %v139 = vstv %s138
    %v140 = vmul.f32 %v120, %v139
    %vm141 = vcmask 58369
    %142 = vst.msk [vmem:[#allocation2] sm:$0x2] %vm141, %v140
    %v143 = vld [vmem:[#allocation2] sm:$0xff]
    %v144 = vlaneseq
    %v145 = vshrl.u32 %v144, 7
    %v146 = vsub.s32 2, %v145
    %v147 = vrot.slane %v29, %v146
    %v148 = vmul.f32 %v143, %v147
    %v149 = vsel %vm30, %v148, 0.0
    %150 = vadd.xlane.f32.xlu0 %v149
    %v151 = vpop.xlane.xlu0 %150
    %v152 = vmul.f32 %v143, %v151
    %v153 = vsel %vm30, %v152, 0.0
    %v154 = vrot.slane %v153, 4
    %v155 = vadd.f32 %v153, %v154
    %v156 = vrot.slane %v155, 2
    %v157 = vadd.f32 %v155, %v156
    %v158 = vrot.slane %v157, 1
    %v159 = vadd.f32 %v157, %v158
    %v160 = vsub.f32 %v29, %v159
    %v161 = vlaneseq
    %v162 = vshrl.u32 %v161, 7
    %v163 = vsub.s32 2, %v162
    %v164 = vrot.slane %v160, %v163
    %v165 = vmul.f32 %v143, %v164
    %v166 = vsel %vm30, %v165, 0.0
    %167 = vadd.xlane.f32.xlu0 %v166
    %v168 = vpop.xlane.xlu0 %167
    %v169 = vmul.f32 %v143, %v168
    %v170 = vsel %vm30, %v169, 0.0
    %v171 = vrot.slane %v170, 4
    %v172 = vadd.f32 %v170, %v171
    %v173 = vrot.slane %v172, 2
    %v174 = vadd.f32 %v172, %v173
    %v175 = vrot.slane %v174, 1
    %v176 = vadd.f32 %v174, %v175
    %v177 = vsub.f32 %v160, %v176
    %v178 = vmul.f32 %v177, %v177
    %v180 = vrot.slane %v178, 2
    %v182 = vsel %vm68, %v180, 0.0
    %183 = vadd.xlane.f32.xlu0 %v182
    %v184 = vpop.xlane.xlu0 %183
    %v185 = vrot.slane %v184, 4
    %v186 = vadd.f32 %v184, %v185
    %v187 = vrot.slane %v186, 2
    %v188 = vadd.f32 %v186, %v187
    %v189 = vrot.slane %v188, 1
    %v190 = vadd.f32 %v188, %v189
    %s191 = vtos %v190
    %s192 = smax.f32 %s191, 1e-30
    %v193 = vstv %s192
    %v194 = vrsqrt.pop %v193
    %s195 = vtos %v194
    %v196 = vstv %s195
    %v197 = vmul.f32 %v177, %v196
    %vm198 = vcmask 59394
    %199 = vst.msk [vmem:[#allocation2] sm:$0x4] %vm198, %v197
    %v200 = vld [vmem:[#allocation2] sm:$0xff]
    %v201 = vlaneseq
    %v202 = vshrl.u32 %v201, 7
    %v203 = vsub.s32 3, %v202
    %v204 = vrot.slane %v29, %v203
    %v205 = vmul.f32 %v200, %v204
    %v206 = vsel %vm30, %v205, 0.0
    %207 = vadd.xlane.f32.xlu0 %v206
    %v208 = vpop.xlane.xlu0 %207
    %v209 = vmul.f32 %v200, %v208
    %v210 = vsel %vm30, %v209, 0.0
    %v211 = vrot.slane %v210, 4
    %v212 = vadd.f32 %v210, %v211
    %v213 = vrot.slane %v212, 2
    %v214 = vadd.f32 %v212, %v213
    %v215 = vrot.slane %v214, 1
    %v216 = vadd.f32 %v214, %v215
    %v217 = vsub.f32 %v29, %v216
    %v218 = vlaneseq
    %v219 = vshrl.u32 %v218, 7
    %v220 = vsub.s32 3, %v219
    %v221 = vrot.slane %v217, %v220
    %v222 = vmul.f32 %v200, %v221
    %v223 = vsel %vm30, %v222, 0.0
    %224 = vadd.xlane.f32.xlu0 %v223
    %v225 = vpop.xlane.xlu0 %224
    %v226 = vmul.f32 %v200, %v225
    %v227 = vsel %vm30, %v226, 0.0
    %v228 = vrot.slane %v227, 4
    %v229 = vadd.f32 %v227, %v228
    %v230 = vrot.slane %v229, 2
    %v231 = vadd.f32 %v229, %v230
    %v232 = vrot.slane %v231, 1
    %v233 = vadd.f32 %v231, %v232
    %v234 = vsub.f32 %v217, %v233
    %v235 = vmul.f32 %v234, %v234
    %v237 = vrot.slane %v235, 3
    %v239 = vsel %vm68, %v237, 0.0
    %240 = vadd.xlane.f32.xlu0 %v239
    %v241 = vpop.xlane.xlu0 %240
    %v242 = vrot.slane %v241, 4
    %v243 = vadd.f32 %v241, %v242
    %v244 = vrot.slane %v243, 2
    %v245 = vadd.f32 %v243, %v244
    %v246 = vrot.slane %v245, 1
    %v247 = vadd.f32 %v245, %v246
    %s248 = vtos %v247
    %s249 = smax.f32 %s248, 1e-30
    %v250 = vstv %s249
    %v251 = vrsqrt.pop %v250
    %s252 = vtos %v251
    %v253 = vstv %s252
    %v254 = vmul.f32 %v234, %v253
    %vm255 = vcmask 60419
    %256 = vst.msk [vmem:[#allocation2] sm:$0x8] %vm255, %v254
    %v257 = vld [vmem:[#allocation2] sm:$0xff]
    %v258 = vlaneseq
    %v259 = vshrl.u32 %v258, 7
    %v260 = vsub.s32 4, %v259
    %v261 = vrot.slane %v29, %v260
    %v262 = vmul.f32 %v257, %v261
    %v263 = vsel %vm30, %v262, 0.0
    %264 = vadd.xlane.f32.xlu0 %v263
    %v265 = vpop.xlane.xlu0 %264
    %v266 = vmul.f32 %v257, %v265
    %v267 = vsel %vm30, %v266, 0.0
    %v268 = vrot.slane %v267, 4
    %v269 = vadd.f32 %v267, %v268
    %v270 = vrot.slane %v269, 2
    %v271 = vadd.f32 %v269, %v270
    %v272 = vrot.slane %v271, 1
    %v273 = vadd.f32 %v271, %v272
    %v274 = vsub.f32 %v29, %v273
    %v275 = vlaneseq
    %v276 = vshrl.u32 %v275, 7
    %v277 = vsub.s32 4, %v276
    %v278 = vrot.slane %v274, %v277
    %v279 = vmul.f32 %v257, %v278
    %v280 = vsel %vm30, %v279, 0.0
    %281 = vadd.xlane.f32.xlu0 %v280
    %v282 = vpop.xlane.xlu0 %281
    %v283 = vmul.f32 %v257, %v282
    %v284 = vsel %vm30, %v283, 0.0
    %v285 = vrot.slane %v284, 4
    %v286 = vadd.f32 %v284, %v285
    %v287 = vrot.slane %v286, 2
    %v288 = vadd.f32 %v286, %v287
    %v289 = vrot.slane %v288, 1
    %v290 = vadd.f32 %v288, %v289
    %v291 = vsub.f32 %v274, %v290
    %v292 = vmul.f32 %v291, %v291
    %v294 = vrot.slane %v292, 4
    %v296 = vsel %vm68, %v294, 0.0
    %297 = vadd.xlane.f32.xlu0 %v296
    %v298 = vpop.xlane.xlu0 %297
    %v299 = vrot.slane %v298, 4
    %v300 = vadd.f32 %v298, %v299
    %v301 = vrot.slane %v300, 2
    %v302 = vadd.f32 %v300, %v301
    %v303 = vrot.slane %v302, 1
    %v304 = vadd.f32 %v302, %v303
    %s305 = vtos %v304
    %s306 = smax.f32 %s305, 1e-30
    %v307 = vstv %s306
    %v308 = vrsqrt.pop %v307
    %s309 = vtos %v308
    %v310 = vstv %s309
    %v311 = vmul.f32 %v291, %v310
    %vm312 = vcmask 61444
    %313 = vst.msk [vmem:[#allocation2] sm:$0x10] %vm312, %v311
    %v314 = vld [vmem:[#allocation2] sm:$0xff]
    %v315 = vlaneseq
    %v316 = vshrl.u32 %v315, 7
    %v317 = vsub.s32 5, %v316
    %v318 = vrot.slane %v29, %v317
    %v319 = vmul.f32 %v314, %v318
    %v320 = vsel %vm30, %v319, 0.0
    %321 = vadd.xlane.f32.xlu0 %v320
    %v322 = vpop.xlane.xlu0 %321
    %v323 = vmul.f32 %v314, %v322
    %v324 = vsel %vm30, %v323, 0.0
    %v325 = vrot.slane %v324, 4
    %v326 = vadd.f32 %v324, %v325
    %v327 = vrot.slane %v326, 2
    %v328 = vadd.f32 %v326, %v327
    %v329 = vrot.slane %v328, 1
    %v330 = vadd.f32 %v328, %v329
    %v331 = vsub.f32 %v29, %v330
    %v332 = vlaneseq
    %v333 = vshrl.u32 %v332, 7
    %v334 = vsub.s32 5, %v333
    %v335 = vrot.slane %v331, %v334
    %v336 = vmul.f32 %v314, %v335
    %v337 = vsel %vm30, %v336, 0.0
    %338 = vadd.xlane.f32.xlu0 %v337
    %v339 = vpop.xlane.xlu0 %338
    %v340 = vmul.f32 %v314, %v339
    %v341 = vsel %vm30, %v340, 0.0
    %v342 = vrot.slane %v341, 4
    %v343 = vadd.f32 %v341, %v342
    %v344 = vrot.slane %v343, 2
    %v345 = vadd.f32 %v343, %v344
    %v346 = vrot.slane %v345, 1
    %v347 = vadd.f32 %v345, %v346
    %v348 = vsub.f32 %v331, %v347
    %v349 = vmul.f32 %v348, %v348
    %v351 = vrot.slane %v349, 5
    %v353 = vsel %vm68, %v351, 0.0
    %354 = vadd.xlane.f32.xlu0 %v353
    %v355 = vpop.xlane.xlu0 %354
    %v356 = vrot.slane %v355, 4
    %v357 = vadd.f32 %v355, %v356
    %v358 = vrot.slane %v357, 2
    %v359 = vadd.f32 %v357, %v358
    %v360 = vrot.slane %v359, 1
    %v361 = vadd.f32 %v359, %v360
    %s362 = vtos %v361
    %s363 = smax.f32 %s362, 1e-30
    %v364 = vstv %s363
    %v365 = vrsqrt.pop %v364
    %s366 = vtos %v365
    %v367 = vstv %s366
    %v368 = vmul.f32 %v348, %v367
    %vm369 = vcmask 62469
    %370 = vst.msk [vmem:[#allocation2] sm:$0x20] %vm369, %v368
    %v371 = vld [vmem:[#allocation2] sm:$0xff]
    %v372 = vlaneseq
    %v373 = vshrl.u32 %v372, 7
    %v374 = vsub.s32 6, %v373
    %v375 = vrot.slane %v29, %v374
    %v376 = vmul.f32 %v371, %v375
    %v377 = vsel %vm30, %v376, 0.0
    %378 = vadd.xlane.f32.xlu0 %v377
    %v379 = vpop.xlane.xlu0 %378
    %v380 = vmul.f32 %v371, %v379
    %v381 = vsel %vm30, %v380, 0.0
    %v382 = vrot.slane %v381, 4
    %v383 = vadd.f32 %v381, %v382
    %v384 = vrot.slane %v383, 2
    %v385 = vadd.f32 %v383, %v384
    %v386 = vrot.slane %v385, 1
    %v387 = vadd.f32 %v385, %v386
    %v388 = vsub.f32 %v29, %v387
    %v389 = vlaneseq
    %v390 = vshrl.u32 %v389, 7
    %v391 = vsub.s32 6, %v390
    %v392 = vrot.slane %v388, %v391
    %v393 = vmul.f32 %v371, %v392
    %v394 = vsel %vm30, %v393, 0.0
    %395 = vadd.xlane.f32.xlu0 %v394
    %v396 = vpop.xlane.xlu0 %395
    %v397 = vmul.f32 %v371, %v396
    %v398 = vsel %vm30, %v397, 0.0
    %v399 = vrot.slane %v398, 4
    %v400 = vadd.f32 %v398, %v399
    %v401 = vrot.slane %v400, 2
    %v402 = vadd.f32 %v400, %v401
    %v403 = vrot.slane %v402, 1
    %v404 = vadd.f32 %v402, %v403
    %v405 = vsub.f32 %v388, %v404
    %v406 = vmul.f32 %v405, %v405
    %v408 = vrot.slane %v406, 6
    %v410 = vsel %vm68, %v408, 0.0
    %411 = vadd.xlane.f32.xlu0 %v410
    %v412 = vpop.xlane.xlu0 %411
    %v413 = vrot.slane %v412, 4
    %v414 = vadd.f32 %v412, %v413
    %v415 = vrot.slane %v414, 2
    %v416 = vadd.f32 %v414, %v415
    %v417 = vrot.slane %v416, 1
    %v418 = vadd.f32 %v416, %v417
    %s419 = vtos %v418
    %s420 = smax.f32 %s419, 1e-30
    %v421 = vstv %s420
    %v422 = vrsqrt.pop %v421
    %s423 = vtos %v422
    %v424 = vstv %s423
    %v425 = vmul.f32 %v405, %v424
    %vm426 = vcmask 63494
    %427 = vst.msk [vmem:[#allocation2] sm:$0x40] %vm426, %v425
    %v428 = vld [vmem:[#allocation2] sm:$0xff]
    %v429 = vlaneseq
    %v430 = vshrl.u32 %v429, 7
    %v431 = vsub.s32 7, %v430
    %v432 = vrot.slane %v29, %v431
    %v433 = vmul.f32 %v428, %v432
    %v434 = vsel %vm30, %v433, 0.0
    %435 = vadd.xlane.f32.xlu0 %v434
    %v436 = vpop.xlane.xlu0 %435
    %v437 = vmul.f32 %v428, %v436
    %v438 = vsel %vm30, %v437, 0.0
    %v439 = vrot.slane %v438, 4
    %v440 = vadd.f32 %v438, %v439
    %v441 = vrot.slane %v440, 2
    %v442 = vadd.f32 %v440, %v441
    %v443 = vrot.slane %v442, 1
    %v444 = vadd.f32 %v442, %v443
    %v445 = vsub.f32 %v29, %v444
    %v446 = vlaneseq
    %v447 = vshrl.u32 %v446, 7
    %v448 = vsub.s32 7, %v447
    %v449 = vrot.slane %v445, %v448
    %v450 = vmul.f32 %v428, %v449
    %v451 = vsel %vm30, %v450, 0.0
    %452 = vadd.xlane.f32.xlu0 %v451
    %v453 = vpop.xlane.xlu0 %452
    %v454 = vmul.f32 %v428, %v453
    %v455 = vsel %vm30, %v454, 0.0
    %v456 = vrot.slane %v455, 4
    %v457 = vadd.f32 %v455, %v456
    %v458 = vrot.slane %v457, 2
    %v459 = vadd.f32 %v457, %v458
    %v460 = vrot.slane %v459, 1
    %v461 = vadd.f32 %v459, %v460
    %v462 = vsub.f32 %v445, %v461
    %v463 = vmul.f32 %v462, %v462
    %v465 = vrot.slane %v463, 7
    %v467 = vsel %vm68, %v465, 0.0
    %468 = vadd.xlane.f32.xlu0 %v467
    %v469 = vpop.xlane.xlu0 %468
    %v470 = vrot.slane %v469, 4
    %v471 = vadd.f32 %v469, %v470
    %v472 = vrot.slane %v471, 2
    %v473 = vadd.f32 %v471, %v472
    %v474 = vrot.slane %v473, 1
    %v475 = vadd.f32 %v473, %v474
    %s476 = vtos %v475
    %s477 = smax.f32 %s476, 1e-30
    %v478 = vstv %s477
    %v479 = vrsqrt.pop %v478
    %s480 = vtos %v479
    %v481 = vstv %s480
    %v482 = vmul.f32 %v462, %v481
    %vm483 = vcmask 64519
    %484 = vst.msk [vmem:[#allocation2] sm:$0x80] %vm483, %v482
    %v485 = vld [vmem:[#allocation2] sm:$0xff]
    %v486 = vrsqrt.pop %v28
    %v487 = vmul.f32 %v28, %v486
    %vm488 = vcmp.eq.f32.partialorder %v28, inf
    %v489 = vsel %vm488, %v28, %v487
    %vm490 = vcmp.eq.f32.partialorder %v28, 0.0
    %v491 = vand.u32 %v28, 2147483648
    %v492 = vsel %vm490, %v491, %v489
    %494 = vset.pattern.permute.xlu0 0
    %495 = vperm.xlu0 %494, %v492
    %v496 = vpop.permute.xlu0 %495
    %v498 = vmul.f32 %v485, %v496
    %499 = vxpose.xlu0.b32.start [1/16] %v498, 128
    %500 = vxpose.xlu0.b32.cont [2/16] 0.0, 128
    %501 = vxpose.xlu0.b32.cont [3/16] 0.0, 128
    %502 = vxpose.xlu0.b32.cont [4/16] 0.0, 128
    %503 = vxpose.xlu0.b32.cont [5/16] 0.0, 128
    %504 = vxpose.xlu0.b32.cont [6/16] 0.0, 128
    %505 = vxpose.xlu0.b32.cont [7/16] 0.0, 128
    %506 = vxpose.xlu0.b32.cont [8/16] 0.0, 128
    %507 = vxpose.xlu0.b32.cont [9/16] 0.0, 128
    %508 = vxpose.xlu0.b32.cont [10/16] 0.0, 128
    %509 = vxpose.xlu0.b32.cont [11/16] 0.0, 128
    %510 = vxpose.xlu0.b32.cont [12/16] 0.0, 128
    %511 = vxpose.xlu0.b32.cont [13/16] 0.0, 128
    %512 = vxpose.xlu0.b32.cont [14/16] 0.0, 128
    %513 = vxpose.xlu0.b32.cont [15/16] 0.0, 128
    %514 = vxpose.xlu0.b32.end [16/16] 0.0, 128
    %v515 = vpop.trf.xlu0
    %v516 = vpop.trf.xlu0
    %v517 = vpop.trf.xlu0
    %v518 = vpop.trf.xlu0
    %v519 = vpop.trf.xlu0
    %v520 = vpop.trf.xlu0
    %v521 = vpop.trf.xlu0
    %v522 = vpop.trf.xlu0
    %v523 = vpop.trf.xlu0
    %v524 = vpop.trf.xlu0
    %v525 = vpop.trf.xlu0
    %v526 = vpop.trf.xlu0
    %v527 = vpop.trf.xlu0
    %v528 = vpop.trf.xlu0
    %v529 = vpop.trf.xlu0
    %v530 = vpop.trf.xlu0
    %v532 = vsel %vm30, %v515, 0
    %534 = vmatprep.subr.mxu0 0.0
    %535 = vmatpush1.msra.mxu0 %v498
    %536 = vmatprep.subr.mxu0 0.0
    %537 = vmatpush1.msra.mxu0 0.0
    %538 = vmatprep.subr.mxu0 0.0
    %539 = vmatpush1.msra.mxu0 0.0
    %540 = vmatprep.subr.mxu0 0.0
    %541 = vmatpush1.msra.mxu0 0.0
    %542 = vmatprep.subr.mxu0 0.0
    %543 = vmatpush1.msra.mxu0 0.0
    %544 = vmatprep.subr.mxu0 0.0
    %545 = vmatpush1.msra.mxu0 0.0
    %546 = vmatprep.subr.mxu0 0.0
    %547 = vmatpush1.msra.mxu0 0.0
    %548 = vmatprep.subr.mxu0 0.0
    %549 = vmatpush1.msra.mxu0 0.0
    %550 = vmatprep.subr.mxu0 0.0
    %551 = vmatpush1.msra.mxu0 0.0
    %552 = vmatprep.subr.mxu0 0.0
    %553 = vmatpush1.msra.mxu0 0.0
    %554 = vmatprep.subr.mxu0 0.0
    %555 = vmatpush1.msra.mxu0 0.0
    %556 = vmatprep.subr.mxu0 0.0
    %557 = vmatpush1.msra.mxu0 0.0
    %558 = vmatprep.subr.mxu0 0.0
    %559 = vmatpush1.msra.mxu0 0.0
    %560 = vmatprep.subr.mxu0 0.0
    %561 = vmatpush1.msra.mxu0 0.0
    %562 = vmatprep.subr.mxu0 0.0
    %563 = vmatpush1.msra.mxu0 0.0
    %564 = vmatprep.subr.mxu0 0.0
    %565 = vmatpush1.msra.mxu0 0.0
    %566 = vmatprep.subr.mxu0 0.0
    %567 = vmatpush1.msra.mxu0 0.0
    %568 = vmatprep.subr.mxu0 0.0
    %569 = vmatpush1.msra.mxu0 0.0
    %570 = vmatprep.subr.mxu0 0.0
    %571 = vmatpush1.msra.mxu0 0.0
    %572 = vmatprep.subr.mxu0 0.0
    %573 = vmatpush1.msra.mxu0 0.0
    %574 = vmatprep.subr.mxu0 0.0
    %575 = vmatpush1.msra.mxu0 0.0
    %576 = vmatprep.subr.mxu0 0.0
    %577 = vmatpush1.msra.mxu0 0.0
    %578 = vmatprep.subr.mxu0 0.0
    %579 = vmatpush1.msra.mxu0 0.0
    %580 = vmatprep.subr.mxu0 0.0
    %581 = vmatpush1.msra.mxu0 0.0
    %582 = vmatprep.subr.mxu0 0.0
    %583 = vmatpush1.msra.mxu0 0.0
    %584 = vmatprep.subr.mxu0 0.0
    %585 = vmatpush1.msra.mxu0 0.0
    %586 = vmatprep.subr.mxu0 0.0
    %587 = vmatpush1.msra.mxu0 0.0
    %588 = vmatprep.subr.mxu0 0.0
    %589 = vmatpush1.msra.mxu0 0.0
    %590 = vmatprep.subr.mxu0 0.0
    %591 = vmatpush1.msra.mxu0 0.0
    %592 = vmatprep.subr.mxu0 0.0
    %593 = vmatpush1.msra.mxu0 0.0
    %594 = vmatprep.subr.mxu0 0.0
    %595 = vmatpush1.msra.mxu0 0.0
    %596 = vmatprep.subr.mxu0 0.0
    %597 = vmatpush1.msra.mxu0 0.0
    %598 = vmatprep.mubr.f32.mxu0 0.0
    %599 = vmatmul.mubr.f32.gmra.mrb[0].mxu0 %v532
    %v600 = vpop.f32.mrb[0].mxu0
    %v601 = vadd.f32 0.0, %v600
    %v602 = vpop.f32.mrb[0].mxu0
    %603 = vdwg.mxu0
    %604 = vst.msk [vmem:[#allocation3] sm:$0xff] %vm30, %v601
    // Predicated region
    $region10: #{full_rank_cov.1} parent=1 // pred_check
      _
    $region11: #{full_rank_cov.1} parent=1 // pred_check_branch
      %606 = sbr.rel (0) target = $region13
    $region12: #{full_rank_cov.1} parent=1 // pred_region
      %s608 = ssub.s32 128, 128
      %609 = vsyncadd [#allocation4], %s608
      %s611 = sshll.u32 [#allocation3], 4
      %s612 = int_to_ptr.vmem [resolvable:$true] %s611
      %614 = dma.vmem_to_hbm [thread:$0]  %s612, 128, %s2, [#allocation4]
    $region13: #{full_rank_cov.1} parent=1 // pred_fallthru
      _
    // Predicated region
    $region14: #{full_rank_cov.1} parent=1 // pred_check
      _
    $region15: #{full_rank_cov.1} parent=1 // pred_check_branch
      %616 = sbr.rel (0) target = $region17
    $region16: #{full_rank_cov.1} parent=1 // pred_region
      %617 = dma.done [#allocation4], 128
    $region17: #{full_rank_cov.1} parent=1 // pred_fallthru
      _
    %618 = vsyncpa [#allocation4], 1

</llo_original>
